<compile_context>
chip_gen: v5e
topology: v5e:2x2
jax: 0.10.0
libtpu: 0.0.40
codegen_flags: <defaults>
</compile_context>

<pallas_src>
import functools

import jax
import jax.numpy as jnp
import numpy as np
from jax.experimental import pallas as pl
from jax.experimental.pallas import tpu as pltpu

EPS = 1e-5


def basic_block_kernel(x_ref, yy_ref, xx_ref, w1_ref, w2_ref, avg_ref,
                       g1_ref, b1_ref, g2_ref, b2_ref, o_ref,
                       *, height, width):
    # x_ref  : (N*C, H*W)        input, NCHW flattened (lane-dense slab)
    # yy_ref : (N*C, H*W) int32  spatial row index of each lane
    # xx_ref : (N*C, H*W) int32  spatial col index of each lane
    # w*_ref : (N*C, 9*N*C)      block-diag conv weights, taps folded into K
    # avg_ref: (N*C, N*C)        1/N where rows share a channel (batch combine)
    # g*_ref, b*_ref : (N*C, 1)  per-row BN gamma / beta
    # o_ref  : (N*C, H*W)        lane-dense output
    nc, length = x_ref.shape

    xf = x_ref[...]
    yy = yy_ref[...]
    xx = xx_ref[...]
    avg = avg_ref[...]
    inv_hw = 1.0 / float(height * width)

    def im2col(a):
        # Build the (9*N*C, H*W) patch matrix: 9 shifted + boundary-masked
        # copies of `a`, stacked on the sublane-aligned row axis so the 9 taps
        # fold into the matmul K dimension.  Shifts are taken from a doubled
        # staging buffer (a single width-L slice per tap, no zero-padded
        # scratch); wrapped-around entries are killed by the masks.
        a2 = jnp.concatenate([a, a], axis=1)                      # (N*C, 2*L)
        pieces = []
        for ky in range(3):
            for kx in range(3):
                oy, ox = ky - 1, kx - 1
                d = (oy * width + ox) % length
                s = a if d == 0 else a2[:, d:d + length]
                conds = []
                if oy > 0:
                    conds.append(yy < height - oy)
                if oy < 0:
                    conds.append(yy >= -oy)
                if ox > 0:
                    conds.append(xx < width - ox)
                if ox < 0:
                    conds.append(xx >= -ox)
                if conds:
                    s = jnp.where(functools.reduce(jnp.logical_and, conds),
                                  s, 0.0)
                pieces.append(s)
        return jnp.concatenate(pieces, axis=0)                    # (9*N*C, L)

    def batchnorm(acc, g, b):
        # Train-mode BN over (N, H, W), single pass: var = E[x^2] - mu^2.
        # `avg` combines the N rows of each channel; the lane reduction
        # finishes the mean over H*W.
        ch_mean = jnp.dot(avg, acc, preferred_element_type=jnp.float32)
        ch_sq = jnp.dot(avg, acc * acc, preferred_element_type=jnp.float32)
        mean = jnp.sum(ch_mean, axis=1, keepdims=True) * inv_hw   # (N*C, 1)
        ex2 = jnp.sum(ch_sq, axis=1, keepdims=True) * inv_hw
        var = ex2 - mean * mean
        inv_std = jax.lax.rsqrt(var + EPS)
        return (acc - mean) * (inv_std * g) + b

    g1, b1 = g1_ref[...], b1_ref[...]
    g2, b2 = g2_ref[...], b2_ref[...]

    # conv1 (one matmul, K = 9*N*C) -> bn1 -> relu
    acc1 = jnp.dot(w1_ref[...], im2col(xf), preferred_element_type=jnp.float32)
    h1 = jnp.maximum(batchnorm(acc1, g1, b1), 0.0)

    # conv2 -> bn2 -> + identity -> relu
    acc2 = jnp.dot(w2_ref[...], im2col(h1), preferred_element_type=jnp.float32)
    out = batchnorm(acc2, g2, b2) + xf
    o_ref[...] = jnp.maximum(out, 0.0)


def basic_block(x_nchw, w1_oihw, gamma1, beta1, w2_oihw, gamma2, beta2):
    """Pallas BasicBlock forward. x_nchw: (N, C, H, W) f32; returns (N, C, H, W)."""
    x = x_nchw.astype(jnp.float32)
    N, C, H, W = x.shape
    NC, L = N * C, H * W

    # Lane-dense activation slab: NCHW flattened to (N*C, H*W).  Contiguous
    # (free) reshape -- no transpose, no spatial zero-padding in HBM.
    xf = x.reshape(NC, L)

    # Spatial coordinate planes for the in-kernel boundary masks (precomputed
    # on host; avoids in-kernel integer div/mod).
    yy = jnp.asarray(np.tile(np.repeat(np.arange(H, dtype=np.int32), W), (NC, 1)))
    xx = jnp.asarray(np.tile(np.tile(np.arange(W, dtype=np.int32), H), (NC, 1)))

    def fold_weights(w_oihw):
        # (Cout, Cin, 3, 3) -> (N*Cout, 9*N*Cin): block-diagonal over the batch
        # (one matmul covers all batches) with the 9 taps folded into K.
        eye = jnp.eye(N, dtype=jnp.float32)
        blocks = [jnp.kron(eye, w_oihw[:, :, ky, kx].astype(jnp.float32))
                  for ky in range(3) for kx in range(3)]
        return jnp.concatenate(blocks, axis=1)

    w1m = fold_weights(w1_oihw)
    w2m = fold_weights(w2_oihw)

    # Batch-combine matrix for BN stats: rows of the same channel average
    # together with weight 1/N.
    r = np.arange(NC)
    avg = jnp.asarray(((r[:, None] % C) == (r[None, :] % C)).astype(np.float32) / N)

    def per_row(p):   # per-channel BN param -> per-row (N*C, 1) column
        return jnp.tile(p.astype(jnp.float32).reshape(1, C), (N, 1)).reshape(NC, 1)

    g1r, b1r = per_row(gamma1), per_row(beta1)
    g2r, b2r = per_row(gamma2), per_row(beta2)

    vmem = pl.BlockSpec(memory_space=pltpu.MemorySpace.VMEM)
    out_flat = pl.pallas_call(
        functools.partial(basic_block_kernel, height=H, width=W),
        out_shape=jax.ShapeDtypeStruct((NC, L), jnp.float32),
        in_specs=[vmem] * 10,
        out_specs=vmem,
    )(xf, yy, xx, w1m, w2m, avg, g1r, b1r, g2r, b2r)
    return out_flat.reshape(N, C, H, W)


def reference(x_nchw, w1, g1, b1, w2, g2, b2):
    """Plain-JAX reference matching the PyTorch forward (train-mode BN)."""
    def conv(x, w):
        return jax.lax.conv_general_dilated(
            x, w, window_strides=(1, 1), padding=((1, 1), (1, 1)),
            dimension_numbers=("NCHW", "OIHW", "NCHW"))

    def bn(x, g, b):
        mu = jnp.mean(x, axis=(0, 2, 3), keepdims=True)
        var = jnp.mean((x - mu) ** 2, axis=(0, 2, 3), keepdims=True)
        return ((x - mu) * jax.lax.rsqrt(var + EPS) * g.reshape(1, -1, 1, 1)
                + b.reshape(1, -1, 1, 1))

    out = jax.nn.relu(bn(conv(x_nchw, w1), g1, b1))
    out = bn(conv(out, w2), g2, b2)
    return jax.nn.relu(out + x_nchw)


if __name__ == "__main__":
    N, C, H, W = 2, 4, 16, 16          # in_channel = out_channel = 4, stride = 1
    key = jax.random.PRNGKey(0)
    kx, kw1, kw2, kg1, kb1, kg2, kb2 = jax.random.split(key, 7)

    x = jax.random.normal(kx, (N, C, H, W), jnp.float32)
    # conv weights in PyTorch OIHW layout, deterministic init
    w1 = 0.3 * jax.random.normal(kw1, (C, C, 3, 3), jnp.float32)
    w2 = 0.3 * jax.random.normal(kw2, (C, C, 3, 3), jnp.float32)
    # BN affine params (PyTorch init is ones/zeros; perturbed here to exercise
    # the affine path while staying deterministic)
    gamma1 = 1.0 + 0.1 * jax.random.normal(kg1, (C,), jnp.float32)
    beta1 = 0.1 * jax.random.normal(kb1, (C,), jnp.float32)
    gamma2 = 1.0 + 0.1 * jax.random.normal(kg2, (C,), jnp.float32)
    beta2 = 0.1 * jax.random.normal(kb2, (C,), jnp.float32)

    out = basic_block(x, w1, gamma1, beta1, w2, gamma2, beta2)
    out = jax.block_until_ready(out)

    ref = jax.block_until_ready(reference(x, w1, gamma1, beta1, w2, gamma2, beta2))
    assert out.shape == (N, C, H, W)
    np.testing.assert_allclose(np.asarray(out), np.asarray(ref),
                               rtol=2e-2, atol=2e-2)
    print("KERNEL_OK")
</pallas_src>

<mosaic_0001>
module attributes {stable_mosaic.version = 11 : i64} {
  func.func @basic_block_kernel(%arg0: memref<8x256xf32, #tpu.memory_space<vmem>>, %arg1: memref<8x256xi32, #tpu.memory_space<vmem>>, %arg2: memref<8x256xi32, #tpu.memory_space<vmem>>, %arg3: memref<8x72xf32, #tpu.memory_space<vmem>>, %arg4: memref<8x72xf32, #tpu.memory_space<vmem>>, %arg5: memref<8x8xf32, #tpu.memory_space<vmem>>, %arg6: memref<8x1xf32, #tpu.memory_space<vmem>>, %arg7: memref<8x1xf32, #tpu.memory_space<vmem>>, %arg8: memref<8x1xf32, #tpu.memory_space<vmem>>, %arg9: memref<8x1xf32, #tpu.memory_space<vmem>>, %arg10: memref<8x256xf32, #tpu.memory_space<vmem>>) attributes {dimension_semantics = [], scalar_prefetch = 0 : i64, scratch_operands = 0 : i64, tpu.core_type = #tpu.core_type<tc>} {
    %c0 = arith.constant 0 : index
    %c0_0 = arith.constant 0 : index
    %0 = vector.load %arg0[%c0, %c0_0] : memref<8x256xf32, #tpu.memory_space<vmem>>, vector<8x256xf32>
    %c0_1 = arith.constant 0 : index
    %c0_2 = arith.constant 0 : index
    %1 = vector.load %arg1[%c0_1, %c0_2] : memref<8x256xi32, #tpu.memory_space<vmem>>, vector<8x256xi32>
    %c0_3 = arith.constant 0 : index
    %c0_4 = arith.constant 0 : index
    %2 = vector.load %arg2[%c0_3, %c0_4] : memref<8x256xi32, #tpu.memory_space<vmem>>, vector<8x256xi32>
    %c0_5 = arith.constant 0 : index
    %c0_6 = arith.constant 0 : index
    %3 = vector.load %arg5[%c0_5, %c0_6] : memref<8x8xf32, #tpu.memory_space<vmem>>, vector<8x8xf32>
    %c0_7 = arith.constant 0 : index
    %c0_8 = arith.constant 0 : index
    %4 = vector.load %arg6[%c0_7, %c0_8] : memref<8x1xf32, #tpu.memory_space<vmem>>, vector<8x1xf32>
    %c0_9 = arith.constant 0 : index
    %c0_10 = arith.constant 0 : index
    %5 = vector.load %arg7[%c0_9, %c0_10] : memref<8x1xf32, #tpu.memory_space<vmem>>, vector<8x1xf32>
    %c0_11 = arith.constant 0 : index
    %c0_12 = arith.constant 0 : index
    %6 = vector.load %arg8[%c0_11, %c0_12] : memref<8x1xf32, #tpu.memory_space<vmem>>, vector<8x1xf32>
    %c0_13 = arith.constant 0 : index
    %c0_14 = arith.constant 0 : index
    %7 = vector.load %arg9[%c0_13, %c0_14] : memref<8x1xf32, #tpu.memory_space<vmem>>, vector<8x1xf32>
    %c0_15 = arith.constant 0 : index
    %c0_16 = arith.constant 0 : index
    %8 = vector.load %arg3[%c0_15, %c0_16] : memref<8x72xf32, #tpu.memory_space<vmem>>, vector<8x72xf32>
    %9 = tpu.concatenate %0, %0 in 1 : vector<8x256xf32>, vector<8x256xf32> -> vector<8x512xf32>
    %10 = vector.extract_strided_slice %9 {offsets = [0, 239], sizes = [8, 256], strides = [1, 1]} : vector<8x512xf32> to vector<8x256xf32>
    %c1_i32 = arith.constant 1 : i32
    %11 = vector.broadcast %c1_i32 : i32 to vector<8x256xi32>
    %12 = arith.cmpi sge, %1, %11 : vector<8x256xi32>
    %c1_i32_17 = arith.constant 1 : i32
    %13 = vector.broadcast %c1_i32_17 : i32 to vector<8x256xi32>
    %14 = arith.cmpi sge, %2, %13 : vector<8x256xi32>
    %15 = arith.andi %12, %14 : vector<8x256xi1>
    %cst = arith.constant 0.000000e+00 : f32
    %16 = vector.broadcast %cst : f32 to vector<8x256xf32>
    %17 = arith.select %15, %10, %16 : vector<8x256xi1>, vector<8x256xf32>
    %18 = vector.extract_strided_slice %9 {offsets = [0, 240], sizes = [8, 256], strides = [1, 1]} : vector<8x512xf32> to vector<8x256xf32>
    %c1_i32_18 = arith.constant 1 : i32
    %19 = vector.broadcast %c1_i32_18 : i32 to vector<8x256xi32>
    %20 = arith.cmpi sge, %1, %19 : vector<8x256xi32>
    %cst_19 = arith.constant 0.000000e+00 : f32
    %21 = vector.broadcast %cst_19 : f32 to vector<8x256xf32>
    %22 = arith.select %20, %18, %21 : vector<8x256xi1>, vector<8x256xf32>
    %23 = vector.extract_strided_slice %9 {offsets = [0, 241], sizes = [8, 256], strides = [1, 1]} : vector<8x512xf32> to vector<8x256xf32>
    %c1_i32_20 = arith.constant 1 : i32
    %24 = vector.broadcast %c1_i32_20 : i32 to vector<8x256xi32>
    %25 = arith.cmpi sge, %1, %24 : vector<8x256xi32>
    %c15_i32 = arith.constant 15 : i32
    %26 = vector.broadcast %c15_i32 : i32 to vector<8x256xi32>
    %27 = arith.cmpi slt, %2, %26 : vector<8x256xi32>
    %28 = arith.andi %25, %27 : vector<8x256xi1>
    %cst_21 = arith.constant 0.000000e+00 : f32
    %29 = vector.broadcast %cst_21 : f32 to vector<8x256xf32>
    %30 = arith.select %28, %23, %29 : vector<8x256xi1>, vector<8x256xf32>
    %31 = vector.extract_strided_slice %9 {offsets = [0, 255], sizes = [8, 256], strides = [1, 1]} : vector<8x512xf32> to vector<8x256xf32>
    %c1_i32_22 = arith.constant 1 : i32
    %32 = vector.broadcast %c1_i32_22 : i32 to vector<8x256xi32>
    %33 = arith.cmpi sge, %2, %32 : vector<8x256xi32>
    %cst_23 = arith.constant 0.000000e+00 : f32
    %34 = vector.broadcast %cst_23 : f32 to vector<8x256xf32>
    %35 = arith.select %33, %31, %34 : vector<8x256xi1>, vector<8x256xf32>
    %36 = vector.extract_strided_slice %9 {offsets = [0, 1], sizes = [8, 256], strides = [1, 1]} : vector<8x512xf32> to vector<8x256xf32>
    %c15_i32_24 = arith.constant 15 : i32
    %37 = vector.broadcast %c15_i32_24 : i32 to vector<8x256xi32>
    %38 = arith.cmpi slt, %2, %37 : vector<8x256xi32>
    %cst_25 = arith.constant 0.000000e+00 : f32
    %39 = vector.broadcast %cst_25 : f32 to vector<8x256xf32>
    %40 = arith.select %38, %36, %39 : vector<8x256xi1>, vector<8x256xf32>
    %41 = vector.extract_strided_slice %9 {offsets = [0, 15], sizes = [8, 256], strides = [1, 1]} : vector<8x512xf32> to vector<8x256xf32>
    %c15_i32_26 = arith.constant 15 : i32
    %42 = vector.broadcast %c15_i32_26 : i32 to vector<8x256xi32>
    %43 = arith.cmpi slt, %1, %42 : vector<8x256xi32>
    %c1_i32_27 = arith.constant 1 : i32
    %44 = vector.broadcast %c1_i32_27 : i32 to vector<8x256xi32>
    %45 = arith.cmpi sge, %2, %44 : vector<8x256xi32>
    %46 = arith.andi %43, %45 : vector<8x256xi1>
    %cst_28 = arith.constant 0.000000e+00 : f32
    %47 = vector.broadcast %cst_28 : f32 to vector<8x256xf32>
    %48 = arith.select %46, %41, %47 : vector<8x256xi1>, vector<8x256xf32>
    %49 = vector.extract_strided_slice %9 {offsets = [0, 16], sizes = [8, 256], strides = [1, 1]} : vector<8x512xf32> to vector<8x256xf32>
    %c15_i32_29 = arith.constant 15 : i32
    %50 = vector.broadcast %c15_i32_29 : i32 to vector<8x256xi32>
    %51 = arith.cmpi slt, %1, %50 : vector<8x256xi32>
    %cst_30 = arith.constant 0.000000e+00 : f32
    %52 = vector.broadcast %cst_30 : f32 to vector<8x256xf32>
    %53 = arith.select %51, %49, %52 : vector<8x256xi1>, vector<8x256xf32>
    %54 = vector.extract_strided_slice %9 {offsets = [0, 17], sizes = [8, 256], strides = [1, 1]} : vector<8x512xf32> to vector<8x256xf32>
    %c15_i32_31 = arith.constant 15 : i32
    %55 = vector.broadcast %c15_i32_31 : i32 to vector<8x256xi32>
    %56 = arith.cmpi slt, %1, %55 : vector<8x256xi32>
    %c15_i32_32 = arith.constant 15 : i32
    %57 = vector.broadcast %c15_i32_32 : i32 to vector<8x256xi32>
    %58 = arith.cmpi slt, %2, %57 : vector<8x256xi32>
    %59 = arith.andi %56, %58 : vector<8x256xi1>
    %cst_33 = arith.constant 0.000000e+00 : f32
    %60 = vector.broadcast %cst_33 : f32 to vector<8x256xf32>
    %61 = arith.select %59, %54, %60 : vector<8x256xi1>, vector<8x256xf32>
    %62 = tpu.concatenate %17, %22, %30, %35, %0, %40, %48, %53, %61 in 0 : vector<8x256xf32>, vector<8x256xf32>, vector<8x256xf32>, vector<8x256xf32>, vector<8x256xf32>, vector<8x256xf32>, vector<8x256xf32>, vector<8x256xf32>, vector<8x256xf32> -> vector<72x256xf32>
    %cst_34 = arith.constant dense<0.000000e+00> : vector<8x256xf32>
    %63 = tpu.matmul %8, %62, %cst_34 {dimension_numbers = #tpu.dot_dimension_numbers<[1], [0], [0], [1], [0, 0, 1, 1], [], []>} : vector<8x72xf32>, vector<72x256xf32>, vector<8x256xf32> -> vector<8x256xf32>
    %cst_35 = arith.constant dense<0.000000e+00> : vector<8x256xf32>
    %64 = tpu.matmul %3, %63, %cst_35 {dimension_numbers = #tpu.dot_dimension_numbers<[1], [0], [0], [1], [0, 0, 1, 1], [], []>} : vector<8x8xf32>, vector<8x256xf32>, vector<8x256xf32> -> vector<8x256xf32>
    %65 = arith.mulf %63, %63 : vector<8x256xf32>
    %cst_36 = arith.constant dense<0.000000e+00> : vector<8x256xf32>
    %66 = tpu.matmul %3, %65, %cst_36 {dimension_numbers = #tpu.dot_dimension_numbers<[1], [0], [0], [1], [0, 0, 1, 1], [], []>} : vector<8x8xf32>, vector<8x256xf32>, vector<8x256xf32> -> vector<8x256xf32>
    %cst_37 = arith.constant dense<0.000000e+00> : vector<8xf32>
    %67 = vector.multi_reduction <add>, %64, %cst_37 [1] : vector<8x256xf32> to vector<8xf32>
    %68 = vector.shape_cast %67 : vector<8xf32> to vector<8x1xf32>
    %cst_38 = arith.constant 3.906250e-03 : f32
    %69 = vector.broadcast %cst_38 : f32 to vector<8x1xf32>
    %70 = arith.mulf %68, %69 : vector<8x1xf32>
    %cst_39 = arith.constant dense<0.000000e+00> : vector<8xf32>
    %71 = vector.multi_reduction <add>, %66, %cst_39 [1] : vector<8x256xf32> to vector<8xf32>
    %72 = vector.shape_cast %71 : vector<8xf32> to vector<8x1xf32>
    %cst_40 = arith.constant 3.906250e-03 : f32
    %73 = vector.broadcast %cst_40 : f32 to vector<8x1xf32>
    %74 = arith.mulf %72, %73 : vector<8x1xf32>
    %75 = arith.mulf %70, %70 : vector<8x1xf32>
    %76 = arith.subf %74, %75 : vector<8x1xf32>
    %cst_41 = arith.constant 9.99999974E-6 : f32
    %77 = vector.broadcast %cst_41 : f32 to vector<8x1xf32>
    %78 = arith.addf %76, %77 : vector<8x1xf32>
    %79 = math.rsqrt %78 : vector<8x1xf32>
    %80 = vector.broadcast %70 : vector<8x1xf32> to vector<8x256xf32>
    %81 = arith.subf %63, %80 : vector<8x256xf32>
    %82 = arith.mulf %79, %4 : vector<8x1xf32>
    %83 = vector.broadcast %82 : vector<8x1xf32> to vector<8x256xf32>
    %84 = arith.mulf %81, %83 : vector<8x256xf32>
    %85 = vector.broadcast %5 : vector<8x1xf32> to vector<8x256xf32>
    %86 = arith.addf %84, %85 : vector<8x256xf32>
    %cst_42 = arith.constant 0.000000e+00 : f32
    %87 = vector.broadcast %cst_42 : f32 to vector<8x256xf32>
    %88 = arith.maximumf %86, %87 : vector<8x256xf32>
    %c0_43 = arith.constant 0 : index
    %c0_44 = arith.constant 0 : index
    %89 = vector.load %arg4[%c0_43, %c0_44] : memref<8x72xf32, #tpu.memory_space<vmem>>, vector<8x72xf32>
    %90 = tpu.concatenate %88, %88 in 1 : vector<8x256xf32>, vector<8x256xf32> -> vector<8x512xf32>
    %91 = vector.extract_strided_slice %90 {offsets = [0, 239], sizes = [8, 256], strides = [1, 1]} : vector<8x512xf32> to vector<8x256xf32>
    %c1_i32_45 = arith.constant 1 : i32
    %92 = vector.broadcast %c1_i32_45 : i32 to vector<8x256xi32>
    %93 = arith.cmpi sge, %1, %92 : vector<8x256xi32>
    %c1_i32_46 = arith.constant 1 : i32
    %94 = vector.broadcast %c1_i32_46 : i32 to vector<8x256xi32>
    %95 = arith.cmpi sge, %2, %94 : vector<8x256xi32>
    %96 = arith.andi %93, %95 : vector<8x256xi1>
    %cst_47 = arith.constant 0.000000e+00 : f32
    %97 = vector.broadcast %cst_47 : f32 to vector<8x256xf32>
    %98 = arith.select %96, %91, %97 : vector<8x256xi1>, vector<8x256xf32>
    %99 = vector.extract_strided_slice %90 {offsets = [0, 240], sizes = [8, 256], strides = [1, 1]} : vector<8x512xf32> to vector<8x256xf32>
    %c1_i32_48 = arith.constant 1 : i32
    %100 = vector.broadcast %c1_i32_48 : i32 to vector<8x256xi32>
    %101 = arith.cmpi sge, %1, %100 : vector<8x256xi32>
    %cst_49 = arith.constant 0.000000e+00 : f32
    %102 = vector.broadcast %cst_49 : f32 to vector<8x256xf32>
    %103 = arith.select %101, %99, %102 : vector<8x256xi1>, vector<8x256xf32>
    %104 = vector.extract_strided_slice %90 {offsets = [0, 241], sizes = [8, 256], strides = [1, 1]} : vector<8x512xf32> to vector<8x256xf32>
    %c1_i32_50 = arith.constant 1 : i32
    %105 = vector.broadcast %c1_i32_50 : i32 to vector<8x256xi32>
    %106 = arith.cmpi sge, %1, %105 : vector<8x256xi32>
    %c15_i32_51 = arith.constant 15 : i32
    %107 = vector.broadcast %c15_i32_51 : i32 to vector<8x256xi32>
    %108 = arith.cmpi slt, %2, %107 : vector<8x256xi32>
    %109 = arith.andi %106, %108 : vector<8x256xi1>
    %cst_52 = arith.constant 0.000000e+00 : f32
    %110 = vector.broadcast %cst_52 : f32 to vector<8x256xf32>
    %111 = arith.select %109, %104, %110 : vector<8x256xi1>, vector<8x256xf32>
    %112 = vector.extract_strided_slice %90 {offsets = [0, 255], sizes = [8, 256], strides = [1, 1]} : vector<8x512xf32> to vector<8x256xf32>
    %c1_i32_53 = arith.constant 1 : i32
    %113 = vector.broadcast %c1_i32_53 : i32 to vector<8x256xi32>
    %114 = arith.cmpi sge, %2, %113 : vector<8x256xi32>
    %cst_54 = arith.constant 0.000000e+00 : f32
    %115 = vector.broadcast %cst_54 : f32 to vector<8x256xf32>
    %116 = arith.select %114, %112, %115 : vector<8x256xi1>, vector<8x256xf32>
    %117 = vector.extract_strided_slice %90 {offsets = [0, 1], sizes = [8, 256], strides = [1, 1]} : vector<8x512xf32> to vector<8x256xf32>
    %c15_i32_55 = arith.constant 15 : i32
    %118 = vector.broadcast %c15_i32_55 : i32 to vector<8x256xi32>
    %119 = arith.cmpi slt, %2, %118 : vector<8x256xi32>
    %cst_56 = arith.constant 0.000000e+00 : f32
    %120 = vector.broadcast %cst_56 : f32 to vector<8x256xf32>
    %121 = arith.select %119, %117, %120 : vector<8x256xi1>, vector<8x256xf32>
    %122 = vector.extract_strided_slice %90 {offsets = [0, 15], sizes = [8, 256], strides = [1, 1]} : vector<8x512xf32> to vector<8x256xf32>
    %c15_i32_57 = arith.constant 15 : i32
    %123 = vector.broadcast %c15_i32_57 : i32 to vector<8x256xi32>
    %124 = arith.cmpi slt, %1, %123 : vector<8x256xi32>
    %c1_i32_58 = arith.constant 1 : i32
    %125 = vector.broadcast %c1_i32_58 : i32 to vector<8x256xi32>
    %126 = arith.cmpi sge, %2, %125 : vector<8x256xi32>
    %127 = arith.andi %124, %126 : vector<8x256xi1>
    %cst_59 = arith.constant 0.000000e+00 : f32
    %128 = vector.broadcast %cst_59 : f32 to vector<8x256xf32>
    %129 = arith.select %127, %122, %128 : vector<8x256xi1>, vector<8x256xf32>
    %130 = vector.extract_strided_slice %90 {offsets = [0, 16], sizes = [8, 256], strides = [1, 1]} : vector<8x512xf32> to vector<8x256xf32>
    %c15_i32_60 = arith.constant 15 : i32
    %131 = vector.broadcast %c15_i32_60 : i32 to vector<8x256xi32>
    %132 = arith.cmpi slt, %1, %131 : vector<8x256xi32>
    %cst_61 = arith.constant 0.000000e+00 : f32
    %133 = vector.broadcast %cst_61 : f32 to vector<8x256xf32>
    %134 = arith.select %132, %130, %133 : vector<8x256xi1>, vector<8x256xf32>
    %135 = vector.extract_strided_slice %90 {offsets = [0, 17], sizes = [8, 256], strides = [1, 1]} : vector<8x512xf32> to vector<8x256xf32>
    %c15_i32_62 = arith.constant 15 : i32
    %136 = vector.broadcast %c15_i32_62 : i32 to vector<8x256xi32>
    %137 = arith.cmpi slt, %1, %136 : vector<8x256xi32>
    %c15_i32_63 = arith.constant 15 : i32
    %138 = vector.broadcast %c15_i32_63 : i32 to vector<8x256xi32>
    %139 = arith.cmpi slt, %2, %138 : vector<8x256xi32>
    %140 = arith.andi %137, %139 : vector<8x256xi1>
    %cst_64 = arith.constant 0.000000e+00 : f32
    %141 = vector.broadcast %cst_64 : f32 to vector<8x256xf32>
    %142 = arith.select %140, %135, %141 : vector<8x256xi1>, vector<8x256xf32>
    %143 = tpu.concatenate %98, %103, %111, %116, %88, %121, %129, %134, %142 in 0 : vector<8x256xf32>, vector<8x256xf32>, vector<8x256xf32>, vector<8x256xf32>, vector<8x256xf32>, vector<8x256xf32>, vector<8x256xf32>, vector<8x256xf32>, vector<8x256xf32> -> vector<72x256xf32>
    %cst_65 = arith.constant dense<0.000000e+00> : vector<8x256xf32>
    %144 = tpu.matmul %89, %143, %cst_65 {dimension_numbers = #tpu.dot_dimension_numbers<[1], [0], [0], [1], [0, 0, 1, 1], [], []>} : vector<8x72xf32>, vector<72x256xf32>, vector<8x256xf32> -> vector<8x256xf32>
    %cst_66 = arith.constant dense<0.000000e+00> : vector<8x256xf32>
    %145 = tpu.matmul %3, %144, %cst_66 {dimension_numbers = #tpu.dot_dimension_numbers<[1], [0], [0], [1], [0, 0, 1, 1], [], []>} : vector<8x8xf32>, vector<8x256xf32>, vector<8x256xf32> -> vector<8x256xf32>
    %146 = arith.mulf %144, %144 : vector<8x256xf32>
    %cst_67 = arith.constant dense<0.000000e+00> : vector<8x256xf32>
    %147 = tpu.matmul %3, %146, %cst_67 {dimension_numbers = #tpu.dot_dimension_numbers<[1], [0], [0], [1], [0, 0, 1, 1], [], []>} : vector<8x8xf32>, vector<8x256xf32>, vector<8x256xf32> -> vector<8x256xf32>
    %cst_68 = arith.constant dense<0.000000e+00> : vector<8xf32>
    %148 = vector.multi_reduction <add>, %145, %cst_68 [1] : vector<8x256xf32> to vector<8xf32>
    %149 = vector.shape_cast %148 : vector<8xf32> to vector<8x1xf32>
    %cst_69 = arith.constant 3.906250e-03 : f32
    %150 = vector.broadcast %cst_69 : f32 to vector<8x1xf32>
    %151 = arith.mulf %149, %150 : vector<8x1xf32>
    %cst_70 = arith.constant dense<0.000000e+00> : vector<8xf32>
    %152 = vector.multi_reduction <add>, %147, %cst_70 [1] : vector<8x256xf32> to vector<8xf32>
    %153 = vector.shape_cast %152 : vector<8xf32> to vector<8x1xf32>
    %cst_71 = arith.constant 3.906250e-03 : f32
    %154 = vector.broadcast %cst_71 : f32 to vector<8x1xf32>
    %155 = arith.mulf %153, %154 : vector<8x1xf32>
    %156 = arith.mulf %151, %151 : vector<8x1xf32>
    %157 = arith.subf %155, %156 : vector<8x1xf32>
    %cst_72 = arith.constant 9.99999974E-6 : f32
    %158 = vector.broadcast %cst_72 : f32 to vector<8x1xf32>
    %159 = arith.addf %157, %158 : vector<8x1xf32>
    %160 = math.rsqrt %159 : vector<8x1xf32>
    %161 = vector.broadcast %151 : vector<8x1xf32> to vector<8x256xf32>
    %162 = arith.subf %144, %161 : vector<8x256xf32>
    %163 = arith.mulf %160, %6 : vector<8x1xf32>
    %164 = vector.broadcast %163 : vector<8x1xf32> to vector<8x256xf32>
    %165 = arith.mulf %162, %164 : vector<8x256xf32>
    %166 = vector.broadcast %7 : vector<8x1xf32> to vector<8x256xf32>
    %167 = arith.addf %165, %166 : vector<8x256xf32>
    %168 = arith.addf %167, %0 : vector<8x256xf32>
    %cst_73 = arith.constant 0.000000e+00 : f32
    %169 = vector.broadcast %cst_73 : f32 to vector<8x256xf32>
    %170 = arith.maximumf %168, %169 : vector<8x256xf32>
    %c0_74 = arith.constant 0 : index
    %c0_75 = arith.constant 0 : index
    %171 = vector.load %arg10[%c0_74, %c0_75] : memref<8x256xf32, #tpu.memory_space<vmem>>, vector<8x256xf32>
    tpu.vector_store %arg10[%c0_74, %c0_75], %170 {strides = array<i32>} : memref<8x256xf32, #tpu.memory_space<vmem>>, vector<8x256xf32>,
    return
  }
}

</mosaic_0001>

<llo_original>
// kernel: tpu_custom_call.1
$region0: #{tpu_custom_call.1}
  #allocation0 [shape = 'u32[]', space=smem, size = 0x4, offset = 0x4, fixed_abs, tag = 'smem constant byte address 0x4 - core index']
  #allocation1 [shape = 'u32[72,128]{1,0:T(1,128)}', space=vmem, size = 0x9000, scoped, tag = 'internal scratch']
  %s0 = inlined_call_operand.vmem [shape: f32[8,256], index: 0, kind: input, shape index: {}]
  %s1 = inlined_call_operand.vmem [shape: s32[8,256], index: 1, kind: input, shape index: {}]
  %s2 = inlined_call_operand.hbm [shape: s32[8,256], index: 2, kind: input, shape index: {}]
  %s3 = inlined_call_operand.hbm [shape: f32[8,72], index: 3, kind: input, shape index: {}]
  %s4 = inlined_call_operand.hbm [shape: f32[8,72], index: 4, kind: input, shape index: {}]
  %s5 = inlined_call_operand.hbm [shape: f32[8,8], index: 5, kind: input, shape index: {}]
  %s6 = inlined_call_operand.vmem [shape: f32[8,1], index: 6, kind: input, shape index: {}]
  %s7 = inlined_call_operand.vmem [shape: f32[8,1], index: 7, kind: input, shape index: {}]
  %s8 = inlined_call_operand.vmem [shape: f32[8,1], index: 8, kind: input, shape index: {}]
  %s9 = inlined_call_operand.vmem [shape: f32[8,1], index: 9, kind: input, shape index: {}]
  %s10 = inlined_call_operand.hbm [shape: f32[8,256], index: 10, kind: output, shape index: {}]
  %s11 = sld [smem:[#allocation0]]
  $region66: #{tpu_custom_call.1} parent=0
    _
  %s13 = ssub.s32 1, %s11
  %s14 = scalar_select 0, %s13, %s11
  $region1: #{tpu_custom_call.1} parent=0
    #allocation2 [shape = 'u8[8192]{0}', space=vmem, size = 0x2000, scoped, tag = 'input window, operand 2, single buffered']
    #allocation3 [shape = 's32[1]{0}', space=sflag, size = 0x4, scoped, tag = 'scoped memory for tpu_custom_call.1']
    #allocation4 [shape = 's32[1]{0}', space=sflag, size = 0x4, scoped, tag = 'scoped memory for tpu_custom_call.1']
    #allocation5 [shape = 'u8[4096]{0}', space=vmem, size = 0x1000, scoped, tag = 'input window, operand 3, single buffered']
    #allocation6 [shape = 's32[1]{0}', space=sflag, size = 0x4, scoped, tag = 'scoped memory for tpu_custom_call.1']
    #allocation7 [shape = 'u8[4096]{0}', space=vmem, size = 0x1000, scoped, tag = 'input window, operand 4, single buffered']
    #allocation8 [shape = 'u8[4096]{0}', space=vmem, size = 0x1000, scoped, tag = 'input window, operand 5, single buffered']
    #allocation9 [shape = 's32[1]{0}', space=sflag, size = 0x4, scoped, tag = 'scoped memory for tpu_custom_call.1']
    #allocation10 [shape = 'u8[8192]{0}', space=vmem, size = 0x2000, scoped, tag = 'output window, operand 0, single buffered']
    %15 = vsyncpa [#allocation3], 0
    %16 = vsyncpa [#allocation6], 0
    %17 = vsyncpa [#allocation9], 0
    %18 = vsyncpa [#allocation4], 0
    // Predicated region
    $region2: #{tpu_custom_call.1} parent=1 // pred_check
      _
    $region3: #{tpu_custom_call.1} parent=1 // pred_check_branch
      %20 = sbr.rel (0) target = $region5
    $region4: #{tpu_custom_call.1} parent=1 // pred_region
      _
    $region5: #{tpu_custom_call.1} parent=1 // pred_fallthru
      _
    // Predicated region
    $region6: #{tpu_custom_call.1} parent=1 // pred_check
      _
    $region7: #{tpu_custom_call.1} parent=1 // pred_check_branch
      %22 = sbr.rel (0) target = $region9
    $region8: #{tpu_custom_call.1} parent=1 // pred_region
      _
    $region9: #{tpu_custom_call.1} parent=1 // pred_fallthru
      _
    // Predicated region
    $region10: #{tpu_custom_call.1} parent=1 // pred_check
      _
    $region11: #{tpu_custom_call.1} parent=1 // pred_check_branch
      %24 = sbr.rel (0) target = $region13
    $region12: #{tpu_custom_call.1} parent=1 // pred_region
      %26 = vsyncadd [#allocation3], 0
      %s28 = sshll.u32 %s2, 4
      %s29 = int_to_ptr.hbm [resolvable:$true] %s28
      %s30 = sshll.u32 [#allocation2], 4
      %s31 = int_to_ptr.vmem [resolvable:$true] %s30
      %33 = dma.hbm_to_vmem [thread:$0]  %s29, 256, %s31, [#allocation3]
    $region13: #{tpu_custom_call.1} parent=1 // pred_fallthru
      _
    // Predicated region
    $region14: #{tpu_custom_call.1} parent=1 // pred_check
      _
    $region15: #{tpu_custom_call.1} parent=1 // pred_check_branch
      %35 = sbr.rel (0) target = $region17
    $region16: #{tpu_custom_call.1} parent=1 // pred_region
      %37 = vsyncadd [#allocation6], 0
      %s39 = sshll.u32 %s3, 4
      %s40 = int_to_ptr.hbm [resolvable:$true] %s39
      %s41 = sshll.u32 [#allocation5], 4
      %s42 = int_to_ptr.vmem [resolvable:$true] %s41
      %44 = dma.hbm_to_vmem [thread:$0]  %s40, 128, %s42, [#allocation6]
    $region17: #{tpu_custom_call.1} parent=1 // pred_fallthru
      _
    // Predicated region
    $region18: #{tpu_custom_call.1} parent=1 // pred_check
      _
    $region19: #{tpu_custom_call.1} parent=1 // pred_check_branch
      %46 = sbr.rel (0) target = $region21
    $region20: #{tpu_custom_call.1} parent=1 // pred_region
      %48 = vsyncadd [#allocation6], 0
      %s50 = sshll.u32 %s4, 4
      %s51 = int_to_ptr.hbm [resolvable:$true] %s50
      %s52 = sshll.u32 [#allocation7], 4
      %s53 = int_to_ptr.vmem [resolvable:$true] %s52
      %55 = dma.hbm_to_vmem [thread:$0]  %s51, 128, %s53, [#allocation6]
    $region21: #{tpu_custom_call.1} parent=1 // pred_fallthru
      _
    // Predicated region
    $region22: #{tpu_custom_call.1} parent=1 // pred_check
      _
    $region23: #{tpu_custom_call.1} parent=1 // pred_check_branch
      %57 = sbr.rel (0) target = $region25
    $region24: #{tpu_custom_call.1} parent=1 // pred_region
      %59 = vsyncadd [#allocation9], 0
      %s61 = sshll.u32 %s5, 4
      %s62 = int_to_ptr.hbm [resolvable:$true] %s61
      %s63 = sshll.u32 [#allocation8], 4
      %s64 = int_to_ptr.vmem [resolvable:$true] %s63
      %66 = dma.hbm_to_vmem [thread:$0]  %s62, 128, %s64, [#allocation9]
    $region25: #{tpu_custom_call.1} parent=1 // pred_fallthru
      _
    // Predicated region
    $region26: #{tpu_custom_call.1} parent=1 // pred_check
      _
    $region27: #{tpu_custom_call.1} parent=1 // pred_check_branch
      %68 = sbr.rel (0) target = $region29
    $region28: #{tpu_custom_call.1} parent=1 // pred_region
      _
    $region29: #{tpu_custom_call.1} parent=1 // pred_fallthru
      _
    // Predicated region
    $region30: #{tpu_custom_call.1} parent=1 // pred_check
      _
    $region31: #{tpu_custom_call.1} parent=1 // pred_check_branch
      %70 = sbr.rel (0) target = $region33
    $region32: #{tpu_custom_call.1} parent=1 // pred_region
      _
    $region33: #{tpu_custom_call.1} parent=1 // pred_fallthru
      _
    // Predicated region
    $region34: #{tpu_custom_call.1} parent=1 // pred_check
      _
    $region35: #{tpu_custom_call.1} parent=1 // pred_check_branch
      %72 = sbr.rel (0) target = $region37
    $region36: #{tpu_custom_call.1} parent=1 // pred_region
      _
    $region37: #{tpu_custom_call.1} parent=1 // pred_fallthru
      _
    // Predicated region
    $region38: #{tpu_custom_call.1} parent=1 // pred_check
      _
    $region39: #{tpu_custom_call.1} parent=1 // pred_check_branch
      %74 = sbr.rel (0) target = $region41
    $region40: #{tpu_custom_call.1} parent=1 // pred_region
      _
    $region41: #{tpu_custom_call.1} parent=1 // pred_fallthru
      _
    // Predicated region
    $region42: #{tpu_custom_call.1} parent=1 // pred_check
      _
    $region43: #{tpu_custom_call.1} parent=1 // pred_check_branch
      %76 = sbr.rel (0) target = $region45
    $region44: #{tpu_custom_call.1} parent=1 // pred_region
      %78 = dma.done [#allocation3], 256
    $region45: #{tpu_custom_call.1} parent=1 // pred_fallthru
      _
    // Predicated region
    $region46: #{tpu_custom_call.1} parent=1 // pred_check
      _
    $region47: #{tpu_custom_call.1} parent=1 // pred_check_branch
      %80 = sbr.rel (0) target = $region49
    $region48: #{tpu_custom_call.1} parent=1 // pred_region
      %82 = dma.done [#allocation6], 128
    $region49: #{tpu_custom_call.1} parent=1 // pred_fallthru
      _
    // Predicated region
    $region50: #{tpu_custom_call.1} parent=1 // pred_check
      _
    $region51: #{tpu_custom_call.1} parent=1 // pred_check_branch
      %84 = sbr.rel (0) target = $region53
    $region52: #{tpu_custom_call.1} parent=1 // pred_region
      %86 = dma.done [#allocation6], 128
    $region53: #{tpu_custom_call.1} parent=1 // pred_fallthru
      _
    // Predicated region
    $region54: #{tpu_custom_call.1} parent=1 // pred_check
      _
    $region55: #{tpu_custom_call.1} parent=1 // pred_check_branch
      %88 = sbr.rel (0) target = $region57
    $region56: #{tpu_custom_call.1} parent=1 // pred_region
      %90 = dma.done [#allocation9], 128
    $region57: #{tpu_custom_call.1} parent=1 // pred_fallthru
      _
    %v91 = vld [vmem:[%s0] sm:$0xff]
    %v92 = vld [vmem:[%s0 + $0x8] sm:$0xff]
    %v93 = vld [vmem:[%s1] sm:$0xff]
    %v94 = vld [vmem:[%s1 + $0x8] sm:$0xff]
    %v95 = vld [vmem:[#allocation2] sm:$0xff]
    %v96 = vld [vmem:[#allocation2 + $0x8] sm:$0xff]
    %v97 = vld [vmem:[#allocation8] sm:$0xff]
    %v98 = vld [vmem:[%s6] sm:$0xff]
    %v99 = vld [vmem:[%s7] sm:$0xff]
    %v100 = vld [vmem:[%s8] sm:$0xff]
    %v101 = vld [vmem:[%s9] sm:$0xff]
    %v102 = vld [vmem:[#allocation5] sm:$0xff]
    %vm103 = vcmp.ge.s32.totalorder %v93, 1
    %vm104 = vcmp.ge.s32.totalorder %v94, 1
    %vm105 = vcmp.ge.s32.totalorder %v95, 1
    %vm106 = vcmp.ge.s32.totalorder %v96, 1
    %vm107 = vmand %vm103, %vm105
    %vm108 = vmand %vm104, %vm106
    %111 = vrot.lane.b32.xlu0 %v92, 17
    %v112 = vpop.permute.xlu0 %111
    %113 = vrot.lane.b32.xlu0 %v91, 17
    %v114 = vpop.permute.xlu0 %113
    %vm115 = vcmask 138240
    %v116 = vsel %vm115, %v112, %v114
    %v117 = vsel %vm115, %v114, %v112
    %v120 = vsel %vm107, %v116, 0.0
    %v121 = vsel %vm108, %v117, 0.0
    %122 = vrot.lane.b32.xlu0 %v92, 16
    %v123 = vpop.permute.xlu0 %122
    %124 = vrot.lane.b32.xlu0 %v91, 16
    %v125 = vpop.permute.xlu0 %124
    %vm126 = vcmask 130048
    %v127 = vsel %vm126, %v123, %v125
    %v128 = vsel %vm126, %v125, %v123
    %v131 = vsel %vm103, %v127, 0.0
    %v132 = vsel %vm104, %v128, 0.0
    %vm133 = vcmp.lt.s32.totalorder %v95, 15
    %vm134 = vcmp.lt.s32.totalorder %v96, 15
    %vm135 = vmand %vm103, %vm133
    %vm136 = vmand %vm104, %vm134
    %137 = vrot.lane.b32.xlu0 %v92, 15
    %v138 = vpop.permute.xlu0 %137
    %139 = vrot.lane.b32.xlu0 %v91, 15
    %v140 = vpop.permute.xlu0 %139
    %vm141 = vcmask 121856
    %v142 = vsel %vm141, %v138, %v140
    %v143 = vsel %vm141, %v140, %v138
    %v146 = vsel %vm135, %v142, 0.0
    %v147 = vsel %vm136, %v143, 0.0
    %148 = vrot.lane.b32.xlu0 %v92, 1
    %v149 = vpop.permute.xlu0 %148
    %150 = vrot.lane.b32.xlu0 %v91, 1
    %v151 = vpop.permute.xlu0 %150
    %vm152 = vcmask 7168
    %v153 = vsel %vm152, %v149, %v151
    %v154 = vsel %vm152, %v151, %v149
    %v157 = vsel %vm105, %v153, 0.0
    %v158 = vsel %vm106, %v154, 0.0
    %159 = vrot.lane.b32.xlu0 %v91, 127
    %v160 = vpop.permute.xlu0 %159
    %161 = vrot.lane.b32.xlu0 %v92, 127
    %v162 = vpop.permute.xlu0 %161
    %vm163 = vcmask 1039360
    %v164 = vsel %vm163, %v160, %v162
    %v165 = vsel %vm163, %v162, %v160
    %v168 = vsel %vm133, %v164, 0.0
    %v169 = vsel %vm134, %v165, 0.0
    %vm170 = vcmp.lt.s32.totalorder %v93, 15
    %vm171 = vcmp.lt.s32.totalorder %v94, 15
    %vm172 = vmand %vm170, %vm105
    %vm173 = vmand %vm171, %vm106
    %174 = vrot.lane.b32.xlu0 %v91, 113
    %v175 = vpop.permute.xlu0 %174
    %176 = vrot.lane.b32.xlu0 %v92, 113
    %v177 = vpop.permute.xlu0 %176
    %vm178 = vcmask 924672
    %v179 = vsel %vm178, %v175, %v177
    %v180 = vsel %vm178, %v177, %v175
    %v183 = vsel %vm172, %v179, 0.0
    %v184 = vsel %vm173, %v180, 0.0
    %185 = vrot.lane.b32.xlu0 %v91, 112
    %v186 = vpop.permute.xlu0 %185
    %187 = vrot.lane.b32.xlu0 %v92, 112
    %v188 = vpop.permute.xlu0 %187
    %vm189 = vcmask 916480
    %v190 = vsel %vm189, %v186, %v188
    %v191 = vsel %vm189, %v188, %v186
    %v194 = vsel %vm170, %v190, 0.0
    %v195 = vsel %vm171, %v191, 0.0
    %vm196 = vmand %vm170, %vm133
    %vm197 = vmand %vm171, %vm134
    %198 = vrot.lane.b32.xlu0 %v91, 111
    %v199 = vpop.permute.xlu0 %198
    %200 = vrot.lane.b32.xlu0 %v92, 111
    %v201 = vpop.permute.xlu0 %200
    %vm202 = vcmask 908288
    %v203 = vsel %vm202, %v199, %v201
    %v204 = vsel %vm202, %v201, %v199
    %v207 = vsel %vm196, %v203, 0.0
    %v208 = vsel %vm197, %v204, 0.0
    %vm209 = vcmask 588800
    %v211 = vsel %vm209, %v102, 0
    %213 = vmatpush.msra.mxu0 0.0
    %214 = vmatpush.msra.mxu0 0.0
    %215 = vmatpush.msra.mxu0 0.0
    %216 = vmatpush.msra.mxu0 0.0
    %217 = vmatpush.msra.mxu0 0.0
    %218 = vmatpush.msra.mxu0 0.0
    %219 = vmatpush.msra.mxu0 0.0
    %220 = vmatpush.msra.mxu0 %v207
    %221 = vmatpush.msra.mxu0 %v194
    %222 = vmatpush.msra.mxu0 %v183
    %223 = vmatpush.msra.mxu0 %v168
    %224 = vmatpush.msra.mxu0 %v91
    %225 = vmatpush.msra.mxu0 %v157
    %226 = vmatpush.msra.mxu0 %v146
    %227 = vmatpush.msra.mxu0 %v131
    %228 = vmatpush.msra.mxu0 %v120
    %229 = vmatmul.f32.gmra.mxu0 %v211
    %v230 = vpop.f32.mrf.mxu0
    %v231 = vadd.f32 0.0, %v230
    %232 = vdwg.mxu0
    %233 = vmatpush.msra.mxu0 0.0
    %234 = vmatpush.msra.mxu0 0.0
    %235 = vmatpush.msra.mxu0 0.0
    %236 = vmatpush.msra.mxu0 0.0
    %237 = vmatpush.msra.mxu0 0.0
    %238 = vmatpush.msra.mxu0 0.0
    %239 = vmatpush.msra.mxu0 0.0
    %240 = vmatpush.msra.mxu0 %v208
    %241 = vmatpush.msra.mxu0 %v195
    %242 = vmatpush.msra.mxu0 %v184
    %243 = vmatpush.msra.mxu0 %v169
    %244 = vmatpush.msra.mxu0 %v92
    %245 = vmatpush.msra.mxu0 %v158
    %246 = vmatpush.msra.mxu0 %v147
    %247 = vmatpush.msra.mxu0 %v132
    %248 = vmatpush.msra.mxu0 %v121
    %249 = vmatmul.f32.gmra.mxu0 %v211
    %v250 = vpop.f32.mrf.mxu0
    %v251 = vadd.f32 0.0, %v250
    %252 = vdwg.mxu0
    %vm253 = vcmask 64512
    %v255 = vsel %vm253, %v97, 0
    %257 = vmatpush.msra.mxu0 0.0
    %258 = vmatpush.msra.mxu0 0.0
    %259 = vmatpush.msra.mxu0 0.0
    %260 = vmatpush.msra.mxu0 0.0
    %261 = vmatpush.msra.mxu0 0.0
    %262 = vmatpush.msra.mxu0 0.0
    %263 = vmatpush.msra.mxu0 0.0
    %264 = vmatpush.msra.mxu0 0.0
    %265 = vmatpush.msra.mxu0 0.0
    %266 = vmatpush.msra.mxu0 0.0
    %267 = vmatpush.msra.mxu0 0.0
    %268 = vmatpush.msra.mxu0 0.0
    %269 = vmatpush.msra.mxu0 0.0
    %270 = vmatpush.msra.mxu0 0.0
    %271 = vmatpush.msra.mxu0 0.0
    %272 = vmatpush.msra.mxu0 %v231
    %273 = vmatmul.f32.gmra.mxu0 %v255
    %v274 = vpop.f32.mrf.mxu0
    %v275 = vadd.f32 0.0, %v274
    %276 = vdwg.mxu0
    %277 = vmatpush.msra.mxu0 0.0
    %278 = vmatpush.msra.mxu0 0.0
    %279 = vmatpush.msra.mxu0 0.0
    %280 = vmatpush.msra.mxu0 0.0
    %281 = vmatpush.msra.mxu0 0.0
    %282 = vmatpush.msra.mxu0 0.0
    %283 = vmatpush.msra.mxu0 0.0
    %284 = vmatpush.msra.mxu0 0.0
    %285 = vmatpush.msra.mxu0 0.0
    %286 = vmatpush.msra.mxu0 0.0
    %287 = vmatpush.msra.mxu0 0.0
    %288 = vmatpush.msra.mxu0 0.0
    %289 = vmatpush.msra.mxu0 0.0
    %290 = vmatpush.msra.mxu0 0.0
    %291 = vmatpush.msra.mxu0 0.0
    %292 = vmatpush.msra.mxu0 %v251
    %293 = vmatmul.f32.gmra.mxu0 %v255
    %v294 = vpop.f32.mrf.mxu0
    %v295 = vadd.f32 0.0, %v294
    %296 = vdwg.mxu0
    %v297 = vmul.f32 %v231, %v231
    %v298 = vmul.f32 %v251, %v251
    %299 = vmatpush.msra.mxu0 0.0
    %300 = vmatpush.msra.mxu0 0.0
    %301 = vmatpush.msra.mxu0 0.0
    %302 = vmatpush.msra.mxu0 0.0
    %303 = vmatpush.msra.mxu0 0.0
    %304 = vmatpush.msra.mxu0 0.0
    %305 = vmatpush.msra.mxu0 0.0
    %306 = vmatpush.msra.mxu0 0.0
    %307 = vmatpush.msra.mxu0 0.0
    %308 = vmatpush.msra.mxu0 0.0
    %309 = vmatpush.msra.mxu0 0.0
    %310 = vmatpush.msra.mxu0 0.0
    %311 = vmatpush.msra.mxu0 0.0
    %312 = vmatpush.msra.mxu0 0.0
    %313 = vmatpush.msra.mxu0 0.0
    %314 = vmatpush.msra.mxu0 %v297
    %315 = vmatmul.f32.gmra.mxu0 %v255
    %v316 = vpop.f32.mrf.mxu0
    %v317 = vadd.f32 0.0, %v316
    %318 = vdwg.mxu0
    %319 = vmatpush.msra.mxu0 0.0
    %320 = vmatpush.msra.mxu0 0.0
    %321 = vmatpush.msra.mxu0 0.0
    %322 = vmatpush.msra.mxu0 0.0
    %323 = vmatpush.msra.mxu0 0.0
    %324 = vmatpush.msra.mxu0 0.0
    %325 = vmatpush.msra.mxu0 0.0
    %326 = vmatpush.msra.mxu0 0.0
    %327 = vmatpush.msra.mxu0 0.0
    %328 = vmatpush.msra.mxu0 0.0
    %329 = vmatpush.msra.mxu0 0.0
    %330 = vmatpush.msra.mxu0 0.0
    %331 = vmatpush.msra.mxu0 0.0
    %332 = vmatpush.msra.mxu0 0.0
    %333 = vmatpush.msra.mxu0 0.0
    %334 = vmatpush.msra.mxu0 %v298
    %335 = vmatmul.f32.gmra.mxu0 %v255
    %v336 = vpop.f32.mrf.mxu0
    %v337 = vadd.f32 0.0, %v336
    %338 = vdwg.mxu0
    %v339 = vadd.f32 %v275, %v295
    %340 = vadd.xlane.f32.xlu0 %v339
    %v341 = vpop.xlane.xlu0 %340
    %v342 = vmul.f32 %v341, 0.00390625
    %v343 = vadd.f32 %v317, %v337
    %344 = vadd.xlane.f32.xlu0 %v343
    %v345 = vpop.xlane.xlu0 %344
    %v346 = vmul.f32 %v345, 0.00390625
    %v347 = vmul.f32 %v342, %v342
    %v348 = vsub.f32 %v346, %v347
    %v349 = vadd.f32 %v348, 1e-05
    %v350 = vrsqrt.pop %v349
    %v351 = vmul.f32 %v350, %v349
    %v352 = vmul.f32 %v351, %v350
    %v353 = vmul.f32 0.5, %v352
    %v354 = vsub.f32 1.5, %v353
    %v355 = vmul.f32 %v350, %v354
    %vm356 = vweird.f32 %v349
    %vm357 = vweird.f32 %v350
    %vm358 = vmor %vm356, %vm357
    %v359 = vsel %vm358, %v350, %v355
    %v360 = vsub.f32 %v231, %v342
    %v361 = vsub.f32 %v251, %v342
    %v362 = vmul.f32 %v359, %v98
    %364 = vset.pattern.permute.xlu0 0
    %365 = vperm.xlu0 %364, %v362
    %v366 = vpop.permute.xlu0 %365
    %v368 = vmul.f32 %v360, %v366
    %v369 = vmul.f32 %v361, %v366
    %371 = vset.pattern.permute.xlu0 0
    %372 = vperm.xlu0 %371, %v99
    %v373 = vpop.permute.xlu0 %372
    %v375 = vadd.f32 %v368, %v373
    %v376 = vadd.f32 %v369, %v373
    %v377 = vmax.f32 %v375, 0.0
    %v378 = vmax.f32 %v376, 0.0
    %v379 = vld [vmem:[#allocation7] sm:$0xff]
    %382 = vrot.lane.b32.xlu0 %v378, 17
    %v383 = vpop.permute.xlu0 %382
    %384 = vrot.lane.b32.xlu0 %v377, 17
    %v385 = vpop.permute.xlu0 %384
    %v386 = vsel %vm115, %v383, %v385
    %v387 = vsel %vm115, %v385, %v383
    %v390 = vsel %vm107, %v386, 0.0
    %v391 = vsel %vm108, %v387, 0.0
    %392 = vrot.lane.b32.xlu0 %v378, 16
    %v393 = vpop.permute.xlu0 %392
    %394 = vrot.lane.b32.xlu0 %v377, 16
    %v395 = vpop.permute.xlu0 %394
    %v396 = vsel %vm126, %v393, %v395
    %v397 = vsel %vm126, %v395, %v393
    %v400 = vsel %vm103, %v396, 0.0
    %v401 = vsel %vm104, %v397, 0.0
    %402 = vrot.lane.b32.xlu0 %v378, 15
    %v403 = vpop.permute.xlu0 %402
    %404 = vrot.lane.b32.xlu0 %v377, 15
    %v405 = vpop.permute.xlu0 %404
    %v406 = vsel %vm141, %v403, %v405
    %v407 = vsel %vm141, %v405, %v403
    %v410 = vsel %vm135, %v406, 0.0
    %v411 = vsel %vm136, %v407, 0.0
    %412 = vrot.lane.b32.xlu0 %v378, 1
    %v413 = vpop.permute.xlu0 %412
    %414 = vrot.lane.b32.xlu0 %v377, 1
    %v415 = vpop.permute.xlu0 %414
    %v416 = vsel %vm152, %v413, %v415
    %v417 = vsel %vm152, %v415, %v413
    %v420 = vsel %vm105, %v416, 0.0
    %v421 = vsel %vm106, %v417, 0.0
    %422 = vrot.lane.b32.xlu0 %v377, 127
    %v423 = vpop.permute.xlu0 %422
    %424 = vrot.lane.b32.xlu0 %v378, 127
    %v425 = vpop.permute.xlu0 %424
    %v426 = vsel %vm163, %v423, %v425
    %v427 = vsel %vm163, %v425, %v423
    %v430 = vsel %vm133, %v426, 0.0
    %v431 = vsel %vm134, %v427, 0.0
    %432 = vrot.lane.b32.xlu0 %v377, 113
    %v433 = vpop.permute.xlu0 %432
    %434 = vrot.lane.b32.xlu0 %v378, 113
    %v435 = vpop.permute.xlu0 %434
    %v436 = vsel %vm178, %v433, %v435
    %v437 = vsel %vm178, %v435, %v433
    %v440 = vsel %vm172, %v436, 0.0
    %v441 = vsel %vm173, %v437, 0.0
    %442 = vrot.lane.b32.xlu0 %v377, 112
    %v443 = vpop.permute.xlu0 %442
    %444 = vrot.lane.b32.xlu0 %v378, 112
    %v445 = vpop.permute.xlu0 %444
    %v446 = vsel %vm189, %v443, %v445
    %v447 = vsel %vm189, %v445, %v443
    %v450 = vsel %vm170, %v446, 0.0
    %v451 = vsel %vm171, %v447, 0.0
    %452 = vrot.lane.b32.xlu0 %v377, 111
    %v453 = vpop.permute.xlu0 %452
    %454 = vrot.lane.b32.xlu0 %v378, 111
    %v455 = vpop.permute.xlu0 %454
    %v456 = vsel %vm202, %v453, %v455
    %v457 = vsel %vm202, %v455, %v453
    %v460 = vsel %vm196, %v456, 0.0
    %v461 = vsel %vm197, %v457, 0.0
    %v463 = vsel %vm209, %v379, 0
    %465 = vmatpush.msra.mxu0 0.0
    %466 = vmatpush.msra.mxu0 0.0
    %467 = vmatpush.msra.mxu0 0.0
    %468 = vmatpush.msra.mxu0 0.0
    %469 = vmatpush.msra.mxu0 0.0
    %470 = vmatpush.msra.mxu0 0.0
    %471 = vmatpush.msra.mxu0 0.0
    %472 = vmatpush.msra.mxu0 %v460
    %473 = vmatpush.msra.mxu0 %v450
    %474 = vmatpush.msra.mxu0 %v440
    %475 = vmatpush.msra.mxu0 %v430
    %476 = vmatpush.msra.mxu0 %v377
    %477 = vmatpush.msra.mxu0 %v420
    %478 = vmatpush.msra.mxu0 %v410
    %479 = vmatpush.msra.mxu0 %v400
    %480 = vmatpush.msra.mxu0 %v390
    %481 = vmatmul.f32.gmra.mxu0 %v463
    %v482 = vpop.f32.mrf.mxu0
    %v483 = vadd.f32 0.0, %v482
    %484 = vdwg.mxu0
    %485 = vmatpush.msra.mxu0 0.0
    %486 = vmatpush.msra.mxu0 0.0
    %487 = vmatpush.msra.mxu0 0.0
    %488 = vmatpush.msra.mxu0 0.0
    %489 = vmatpush.msra.mxu0 0.0
    %490 = vmatpush.msra.mxu0 0.0
    %491 = vmatpush.msra.mxu0 0.0
    %492 = vmatpush.msra.mxu0 %v461
    %493 = vmatpush.msra.mxu0 %v451
    %494 = vmatpush.msra.mxu0 %v441
    %495 = vmatpush.msra.mxu0 %v431
    %496 = vmatpush.msra.mxu0 %v378
    %497 = vmatpush.msra.mxu0 %v421
    %498 = vmatpush.msra.mxu0 %v411
    %499 = vmatpush.msra.mxu0 %v401
    %500 = vmatpush.msra.mxu0 %v391
    %501 = vmatmul.f32.gmra.mxu0 %v463
    %v502 = vpop.f32.mrf.mxu0
    %v503 = vadd.f32 0.0, %v502
    %504 = vdwg.mxu0
    %505 = vmatpush.msra.mxu0 0.0
    %506 = vmatpush.msra.mxu0 0.0
    %507 = vmatpush.msra.mxu0 0.0
    %508 = vmatpush.msra.mxu0 0.0
    %509 = vmatpush.msra.mxu0 0.0
    %510 = vmatpush.msra.mxu0 0.0
    %511 = vmatpush.msra.mxu0 0.0
    %512 = vmatpush.msra.mxu0 0.0
    %513 = vmatpush.msra.mxu0 0.0
    %514 = vmatpush.msra.mxu0 0.0
    %515 = vmatpush.msra.mxu0 0.0
    %516 = vmatpush.msra.mxu0 0.0
    %517 = vmatpush.msra.mxu0 0.0
    %518 = vmatpush.msra.mxu0 0.0
    %519 = vmatpush.msra.mxu0 0.0
    %520 = vmatpush.msra.mxu0 %v483
    %521 = vmatmul.f32.gmra.mxu0 %v255
    %v522 = vpop.f32.mrf.mxu0
    %v523 = vadd.f32 0.0, %v522
    %524 = vdwg.mxu0
    %525 = vmatpush.msra.mxu0 0.0
    %526 = vmatpush.msra.mxu0 0.0
    %527 = vmatpush.msra.mxu0 0.0
    %528 = vmatpush.msra.mxu0 0.0
    %529 = vmatpush.msra.mxu0 0.0
    %530 = vmatpush.msra.mxu0 0.0
    %531 = vmatpush.msra.mxu0 0.0
    %532 = vmatpush.msra.mxu0 0.0
    %533 = vmatpush.msra.mxu0 0.0
    %534 = vmatpush.msra.mxu0 0.0
    %535 = vmatpush.msra.mxu0 0.0
    %536 = vmatpush.msra.mxu0 0.0
    %537 = vmatpush.msra.mxu0 0.0
    %538 = vmatpush.msra.mxu0 0.0
    %539 = vmatpush.msra.mxu0 0.0
    %540 = vmatpush.msra.mxu0 %v503
    %541 = vmatmul.f32.gmra.mxu0 %v255
    %v542 = vpop.f32.mrf.mxu0
    %v543 = vadd.f32 0.0, %v542
    %544 = vdwg.mxu0
    %v545 = vmul.f32 %v483, %v483
    %v546 = vmul.f32 %v503, %v503
    %547 = vmatpush.msra.mxu0 0.0
    %548 = vmatpush.msra.mxu0 0.0
    %549 = vmatpush.msra.mxu0 0.0
    %550 = vmatpush.msra.mxu0 0.0
    %551 = vmatpush.msra.mxu0 0.0
    %552 = vmatpush.msra.mxu0 0.0
    %553 = vmatpush.msra.mxu0 0.0
    %554 = vmatpush.msra.mxu0 0.0
    %555 = vmatpush.msra.mxu0 0.0
    %556 = vmatpush.msra.mxu0 0.0
    %557 = vmatpush.msra.mxu0 0.0
    %558 = vmatpush.msra.mxu0 0.0
    %559 = vmatpush.msra.mxu0 0.0
    %560 = vmatpush.msra.mxu0 0.0
    %561 = vmatpush.msra.mxu0 0.0
    %562 = vmatpush.msra.mxu0 %v545
    %563 = vmatmul.f32.gmra.mxu0 %v255
    %v564 = vpop.f32.mrf.mxu0
    %v565 = vadd.f32 0.0, %v564
    %566 = vdwg.mxu0
    %567 = vmatpush.msra.mxu0 0.0
    %568 = vmatpush.msra.mxu0 0.0
    %569 = vmatpush.msra.mxu0 0.0
    %570 = vmatpush.msra.mxu0 0.0
    %571 = vmatpush.msra.mxu0 0.0
    %572 = vmatpush.msra.mxu0 0.0
    %573 = vmatpush.msra.mxu0 0.0
    %574 = vmatpush.msra.mxu0 0.0
    %575 = vmatpush.msra.mxu0 0.0
    %576 = vmatpush.msra.mxu0 0.0
    %577 = vmatpush.msra.mxu0 0.0
    %578 = vmatpush.msra.mxu0 0.0
    %579 = vmatpush.msra.mxu0 0.0
    %580 = vmatpush.msra.mxu0 0.0
    %581 = vmatpush.msra.mxu0 0.0
    %582 = vmatpush.msra.mxu0 %v546
    %583 = vmatmul.f32.gmra.mxu0 %v255
    %v584 = vpop.f32.mrf.mxu0
    %v585 = vadd.f32 0.0, %v584
    %586 = vdwg.mxu0
    %v587 = vadd.f32 %v523, %v543
    %588 = vadd.xlane.f32.xlu0 %v587
    %v589 = vpop.xlane.xlu0 %588
    %v590 = vmul.f32 %v589, 0.00390625
    %v591 = vadd.f32 %v565, %v585
    %592 = vadd.xlane.f32.xlu0 %v591
    %v593 = vpop.xlane.xlu0 %592
    %v594 = vmul.f32 %v593, 0.00390625
    %v595 = vmul.f32 %v590, %v590
    %v596 = vsub.f32 %v594, %v595
    %v597 = vadd.f32 %v596, 1e-05
    %v598 = vrsqrt.pop %v597
    %v599 = vmul.f32 %v598, %v597
    %v600 = vmul.f32 %v599, %v598
    %v601 = vmul.f32 0.5, %v600
    %v602 = vsub.f32 1.5, %v601
    %v603 = vmul.f32 %v598, %v602
    %vm604 = vweird.f32 %v597
    %vm605 = vweird.f32 %v598
    %vm606 = vmor %vm604, %vm605
    %v607 = vsel %vm606, %v598, %v603
    %v608 = vsub.f32 %v483, %v590
    %v609 = vsub.f32 %v503, %v590
    %v610 = vmul.f32 %v607, %v100
    %612 = vset.pattern.permute.xlu0 0
    %613 = vperm.xlu0 %612, %v610
    %v614 = vpop.permute.xlu0 %613
    %v616 = vmul.f32 %v608, %v614
    %v617 = vmul.f32 %v609, %v614
    %619 = vset.pattern.permute.xlu0 0
    %620 = vperm.xlu0 %619, %v101
    %v621 = vpop.permute.xlu0 %620
    %v623 = vadd.f32 %v616, %v621
    %v624 = vadd.f32 %v617, %v621
    %v625 = vadd.f32 %v623, %v91
    %v626 = vadd.f32 %v624, %v92
    %v627 = vmax.f32 %v625, 0.0
    %v628 = vmax.f32 %v626, 0.0
    %629 = vst [vmem:[#allocation10] sm:$0xff] %v627
    %630 = vst [vmem:[#allocation10 + $0x8] sm:$0xff] %v628
    // Predicated region
    $region58: #{tpu_custom_call.1} parent=1 // pred_check
      _
    $region59: #{tpu_custom_call.1} parent=1 // pred_check_branch
      %632 = sbr.rel (0) target = $region61
    $region60: #{tpu_custom_call.1} parent=1 // pred_region
      %634 = vsyncadd [#allocation4], 0
      %s636 = sshll.u32 [#allocation10], 4
      %s637 = int_to_ptr.vmem [resolvable:$true] %s636
      %s638 = sshll.u32 %s10, 4
      %s639 = int_to_ptr.hbm [resolvable:$true] %s638
      %641 = dma.vmem_to_hbm [thread:$0]  %s637, 256, %s639, [#allocation4]
    $region61: #{tpu_custom_call.1} parent=1 // pred_fallthru
      _
    // Predicated region
    $region62: #{tpu_custom_call.1} parent=1 // pred_check
      _
    $region63: #{tpu_custom_call.1} parent=1 // pred_check_branch
      %643 = sbr.rel (0) target = $region65
    $region64: #{tpu_custom_call.1} parent=1 // pred_region
      %645 = dma.done [#allocation4], 256
    $region65: #{tpu_custom_call.1} parent=1 // pred_fallthru
      _
    %646 = vsyncpa [#allocation3], 1
    %647 = vsyncpa [#allocation6], 1
    %648 = vsyncpa [#allocation9], 1
    %649 = vsyncpa [#allocation4], 1

</llo_original>
